<compile_context>
chip_gen: v5e
topology: v5e:2x2
jax: 0.10.0
libtpu: 0.0.40
codegen_flags: <defaults>
</compile_context>

<pallas_src>
import jax
import jax.numpy as jnp
from jax.experimental import pallas as pl
from jax.experimental.pallas import tpu as pltpu


LANE = 128      # vreg lane width (last dim)


def _round_up(n, m):
    return ((n + m - 1) // m) * m


# ----------------------------- Pallas kernel -------------------------------

def linear_relu_kernel(x_ref, w_ref, b_ref, o_ref):
    """Single VMEM-resident block: bf16 MXU matmul, f32 accumulate,
    fused f32 bias + ReLU epilogue, f32 store."""
    acc = jnp.dot(x_ref[...], w_ref[...], preferred_element_type=jnp.float32)
    o_ref[...] = jnp.maximum(acc + b_ref[...], 0.0).astype(o_ref.dtype)


def pallas_linear_relu(x2d, w_pad, b_pad):
    """x2d: (M, K) f32; w_pad: (K, Fp) bf16 with Fp % 128 == 0; b_pad: (1, Fp) f32.

    Returns the padded (M, Fp) f32 block; the caller slices off lane padding
    exactly once (single post-kernel slice)."""
    M, K = x2d.shape
    Kw, Fp = w_pad.shape
    assert K == Kw and Fp % LANE == 0

    # bf16 at the kernel boundary: halves x HBM bytes and matches the weight
    # operand dtype for the MXU. No M padding — accept the masked sublane store.
    x_bf16 = x2d.astype(jnp.bfloat16)

    cost = pl.CostEstimate(
        flops=2 * M * K * Fp,
        bytes_accessed=(M * K * 2        # x (bf16)
                        + K * Fp * 2     # w (bf16)
                        + Fp * 4         # bias (f32)
                        + M * Fp * 4),   # out (f32)
        transcendentals=0,
    )

    out = pl.pallas_call(
        linear_relu_kernel,
        out_shape=jax.ShapeDtypeStruct((M, Fp), jnp.float32),
        # Whole problem resident in VMEM (~0.27 MiB): no grid, no pipelining.
        in_specs=[
            pl.BlockSpec(memory_space=pltpu.MemorySpace.VMEM),
            pl.BlockSpec(memory_space=pltpu.MemorySpace.VMEM),
            pl.BlockSpec(memory_space=pltpu.MemorySpace.VMEM),
        ],
        out_specs=pl.BlockSpec(memory_space=pltpu.MemorySpace.VMEM),
        cost_estimate=cost,
    )(x_bf16, w_pad, b_pad)
    return out


# --------------------------- wrapped inner model ----------------------------

class SmallClassifier:
    """Synthetic model to wrap: flatten NCHW -> linear -> ReLU (Pallas)."""

    def __init__(self, in_features, num_classes, key):
        k1, k2 = jax.random.split(key)
        scale = 1.0 / jnp.sqrt(jnp.float32(in_features))
        self.w = jax.random.normal(k1, (in_features, num_classes),
                                   jnp.float32) * scale
        self.b = jax.random.normal(k2, (1, num_classes), jnp.float32) * 0.01
        self.num_classes = num_classes

        # Pad the feature dim to one full lane width (32 -> 128) once, at
        # construction time, and store the weight in bf16 (MXU input dtype,
        # half the HBM bytes). Bias stays f32 (512 B; keeps epilogue exact).
        fp = _round_up(num_classes, LANE)
        self.w_pad = jnp.pad(
            self.w, ((0, 0), (0, fp - num_classes))).astype(jnp.bfloat16)
        self.b_pad = jnp.pad(self.b, ((0, 0), (0, fp - num_classes)))

    def forward(self, x):
        n = x.shape[0]
        x2d = x.reshape(n, -1)                        # NCHW -> (N, C*H*W), row-major
        out = pallas_linear_relu(x2d, self.w_pad, self.b_pad)
        return out[:, :self.num_classes]              # single post-kernel slice


class Wrap:
    """Faithful port of the PyTorch Wrap module: pure getattr dispatch."""

    def __init__(self, model):
        self.model = model

    def __call__(self, *args, func='forward', **kwargs):
        return getattr(self.model, func)(*args, **kwargs)

    # alias to mirror nn.Module.forward naming
    forward = __call__


# --------------------------------- main -------------------------------------

if __name__ == "__main__":
    key = jax.random.PRNGKey(0)
    kx, kp = jax.random.split(key)

    N, C, H, W = 2, 4, 16, 16          # NCHW, matches PyTorch convention
    num_classes = 32
    x = jax.random.normal(kx, (N, C, H, W), jnp.float32)

    model = SmallClassifier(C * H * W, num_classes, kp)
    wrapped = Wrap(model)

    out = wrapped(x, func='forward')   # Wrap dispatch -> model.forward (Pallas)
    out = jax.block_until_ready(out)
    assert out.shape == (N, num_classes)

    # Reference 1: same numerics as the kernel (bf16 operands, f32 accumulate).
    x2d = x.reshape(N, -1)
    ref_bf16 = jnp.maximum(
        jnp.dot(x2d.astype(jnp.bfloat16).astype(jnp.float32),
                model.w_pad[:, :num_classes].astype(jnp.float32)) + model.b,
        0.0)
    assert jnp.allclose(out, ref_bf16, atol=2e-3, rtol=2e-3)

    # Reference 2: original f32 semantics — looser tol covers the bf16 operand cast.
    ref_f32 = jnp.maximum(x2d @ model.w + model.b, 0.0)
    assert jnp.allclose(out, ref_f32, atol=5e-2, rtol=5e-2)

    print("KERNEL_OK")
</pallas_src>

<mosaic_0001>
module attributes {stable_mosaic.version = 11 : i64} {
  func.func @linear_relu_kernel(%arg0: memref<2x1024xbf16, #tpu.memory_space<vmem>>, %arg1: memref<1024x128xbf16, #tpu.memory_space<vmem>>, %arg2: memref<1x128xf32, #tpu.memory_space<vmem>>, %arg3: memref<2x128xf32, #tpu.memory_space<vmem>>) attributes {dimension_semantics = [], scalar_prefetch = 0 : i64, scratch_operands = 0 : i64, tpu.core_type = #tpu.core_type<tc>} {
    %c0 = arith.constant 0 : index
    %c0_0 = arith.constant 0 : index
    %0 = vector.load %arg0[%c0, %c0_0] : memref<2x1024xbf16, #tpu.memory_space<vmem>>, vector<2x1024xbf16>
    %c0_1 = arith.constant 0 : index
    %c0_2 = arith.constant 0 : index
    %1 = vector.load %arg1[%c0_1, %c0_2] : memref<1024x128xbf16, #tpu.memory_space<vmem>>, vector<1024x128xbf16>
    %cst = arith.constant dense<0.000000e+00> : vector<2x128xf32>
    %2 = tpu.matmul %0, %1, %cst {dimension_numbers = #tpu.dot_dimension_numbers<[1], [0], [0], [1], [0, 0, 1, 1], [], []>} : vector<2x1024xbf16>, vector<1024x128xbf16>, vector<2x128xf32> -> vector<2x128xf32>
    %c0_3 = arith.constant 0 : index
    %c0_4 = arith.constant 0 : index
    %3 = vector.load %arg2[%c0_3, %c0_4] : memref<1x128xf32, #tpu.memory_space<vmem>>, vector<1x128xf32>
    %4 = vector.broadcast %3 : vector<1x128xf32> to vector<2x128xf32>
    %5 = arith.addf %2, %4 : vector<2x128xf32>
    %cst_5 = arith.constant 0.000000e+00 : f32
    %6 = vector.broadcast %cst_5 : f32 to vector<2x128xf32>
    %7 = arith.maximumf %5, %6 : vector<2x128xf32>
    %c0_6 = arith.constant 0 : index
    %c0_7 = arith.constant 0 : index
    %8 = vector.load %arg3[%c0_6, %c0_7] : memref<2x128xf32, #tpu.memory_space<vmem>>, vector<2x128xf32>
    tpu.vector_store %arg3[%c0_6, %c0_7], %7 {strides = array<i32>} : memref<2x128xf32, #tpu.memory_space<vmem>>, vector<2x128xf32>,
    return
  }
}

</mosaic_0001>

<llo_original>
// kernel: tpu_custom_call.1
$region0: #{tpu_custom_call.1}
  #allocation0 [shape = 'u32[]', space=smem, size = 0x4, offset = 0x4, fixed_abs, tag = 'smem constant byte address 0x4 - core index']
  #allocation1 [shape = 'u32[72,128]{1,0:T(1,128)}', space=vmem, size = 0x9000, scoped, tag = 'internal scratch']
  %s0 = inlined_call_operand.hbm [shape: bf16[2,1024], index: 0, kind: input, shape index: {}]
  %s1 = inlined_call_operand.hbm [shape: bf16[1024,128], index: 1, kind: input, shape index: {}]
  %s2 = inlined_call_operand.vmem [shape: f32[1,128], index: 2, kind: input, shape index: {}]
  %s3 = inlined_call_operand.hbm [shape: f32[2,128], index: 3, kind: output, shape index: {}]
  %s4 = sld [smem:[#allocation0]]
  $region30: #{tpu_custom_call.1} parent=0
    _
  %s6 = ssub.s32 1, %s4
  %s7 = scalar_select 0, %s6, %s4
  $region1: #{tpu_custom_call.1} parent=0
    #allocation2 [shape = 'u8[4096]{0}', space=vmem, size = 0x1000, scoped, tag = 'input window, operand 0, single buffered']
    #allocation3 [shape = 's32[1]{0}', space=sflag, size = 0x4, scoped, tag = 'scoped memory for tpu_custom_call.1']
    #allocation4 [shape = 's32[1]{0}', space=sflag, size = 0x4, scoped, tag = 'scoped memory for tpu_custom_call.1']
    #allocation5 [shape = 'u8[262144]{0}', space=vmem, size = 0x40000, scoped, tag = 'input window, operand 1, single buffered']
    #allocation6 [shape = 's32[1]{0}', space=sflag, size = 0x4, scoped, tag = 'scoped memory for tpu_custom_call.1']
    #allocation7 [shape = 'u8[1024]{0}', space=vmem, size = 0x400, scoped, tag = 'output window, operand 0, single buffered']
    %8 = vsyncpa [#allocation3], 0
    %9 = vsyncpa [#allocation6], 0
    %10 = vsyncpa [#allocation4], 0
    // Predicated region
    $region2: #{tpu_custom_call.1} parent=1 // pred_check
      _
    $region3: #{tpu_custom_call.1} parent=1 // pred_check_branch
      %12 = sbr.rel (0) target = $region5
    $region4: #{tpu_custom_call.1} parent=1 // pred_region
      %14 = vsyncadd [#allocation3], 0
      %s16 = sshll.u32 %s0, 4
      %s17 = int_to_ptr.hbm [resolvable:$true] %s16
      %s18 = sshll.u32 [#allocation2], 4
      %s19 = int_to_ptr.vmem [resolvable:$true] %s18
      %21 = dma.hbm_to_vmem [thread:$0]  %s17, 128, %s19, [#allocation3]
    $region5: #{tpu_custom_call.1} parent=1 // pred_fallthru
      _
    // Predicated region
    $region6: #{tpu_custom_call.1} parent=1 // pred_check
      _
    $region7: #{tpu_custom_call.1} parent=1 // pred_check_branch
      %23 = sbr.rel (0) target = $region9
    $region8: #{tpu_custom_call.1} parent=1 // pred_region
      %25 = vsyncadd [#allocation6], 0
      %s26 = sshll.u32 %s1, 4
      %s27 = int_to_ptr.hbm [resolvable:$true] %s26
      %s28 = sshll.u32 [#allocation5], 4
      %s29 = int_to_ptr.vmem [resolvable:$true] %s28
      %34 = dma.hbm_to_vmem [thread:$0]  %s27, 8192, %s29, [#allocation6], 64, 64, 4
    $region9: #{tpu_custom_call.1} parent=1 // pred_fallthru
      _
    // Predicated region
    $region10: #{tpu_custom_call.1} parent=1 // pred_check
      _
    $region11: #{tpu_custom_call.1} parent=1 // pred_check_branch
      %36 = sbr.rel (0) target = $region13
    $region12: #{tpu_custom_call.1} parent=1 // pred_region
      _
    $region13: #{tpu_custom_call.1} parent=1 // pred_fallthru
      _
    // Predicated region
    $region14: #{tpu_custom_call.1} parent=1 // pred_check
      _
    $region15: #{tpu_custom_call.1} parent=1 // pred_check_branch
      %38 = sbr.rel (0) target = $region17
    $region16: #{tpu_custom_call.1} parent=1 // pred_region
      %40 = dma.done [#allocation3], 128
    $region17: #{tpu_custom_call.1} parent=1 // pred_fallthru
      _
    // Predicated region
    $region18: #{tpu_custom_call.1} parent=1 // pred_check
      _
    $region19: #{tpu_custom_call.1} parent=1 // pred_check_branch
      %42 = sbr.rel (0) target = $region21
    $region20: #{tpu_custom_call.1} parent=1 // pred_region
      %44 = dma.done [#allocation6], 8192
    $region21: #{tpu_custom_call.1} parent=1 // pred_fallthru
      _
    %v45 = vld [vmem:[#allocation2] sm:$0xff]
    %v46 = vld [vmem:[#allocation5] sm:$0xf]
    %v47 = vld [vmem:[#allocation5 + $0x4] sm:$0xf]
    %v48 = vld [vmem:[#allocation5 + $0x8] sm:$0xf]
    %v49 = vld [vmem:[#allocation5 + $0xc] sm:$0xf]
    %v50 = vld [vmem:[#allocation5 + $0x10] sm:$0xf]
    %v51 = vld [vmem:[#allocation5 + $0x14] sm:$0xf]
    %v52 = vld [vmem:[#allocation5 + $0x18] sm:$0xf]
    %v53 = vld [vmem:[#allocation5 + $0x1c] sm:$0xf]
    %v54 = vld [vmem:[#allocation5 + $0x20] sm:$0xf]
    %v55 = vld [vmem:[#allocation5 + $0x24] sm:$0xf]
    %v56 = vld [vmem:[#allocation5 + $0x28] sm:$0xf]
    %v57 = vld [vmem:[#allocation5 + $0x2c] sm:$0xf]
    %v58 = vld [vmem:[#allocation5 + $0x30] sm:$0xf]
    %v59 = vld [vmem:[#allocation5 + $0x34] sm:$0xf]
    %v60 = vld [vmem:[#allocation5 + $0x38] sm:$0xf]
    %v61 = vld [vmem:[#allocation5 + $0x3c] sm:$0xf]
    %v62 = vld [vmem:[#allocation5 + $0x40] sm:$0xf]
    %v63 = vld [vmem:[#allocation5 + $0x44] sm:$0xf]
    %v64 = vld [vmem:[#allocation5 + $0x48] sm:$0xf]
    %v65 = vld [vmem:[#allocation5 + $0x4c] sm:$0xf]
    %v66 = vld [vmem:[#allocation5 + $0x50] sm:$0xf]
    %v67 = vld [vmem:[#allocation5 + $0x54] sm:$0xf]
    %v68 = vld [vmem:[#allocation5 + $0x58] sm:$0xf]
    %v69 = vld [vmem:[#allocation5 + $0x5c] sm:$0xf]
    %v70 = vld [vmem:[#allocation5 + $0x60] sm:$0xf]
    %v71 = vld [vmem:[#allocation5 + $0x64] sm:$0xf]
    %v72 = vld [vmem:[#allocation5 + $0x68] sm:$0xf]
    %v73 = vld [vmem:[#allocation5 + $0x6c] sm:$0xf]
    %v74 = vld [vmem:[#allocation5 + $0x70] sm:$0xf]
    %v75 = vld [vmem:[#allocation5 + $0x74] sm:$0xf]
    %v76 = vld [vmem:[#allocation5 + $0x78] sm:$0xf]
    %v77 = vld [vmem:[#allocation5 + $0x7c] sm:$0xf]
    %v78 = vld [vmem:[#allocation5 + $0x80] sm:$0xf]
    %v79 = vld [vmem:[#allocation5 + $0x84] sm:$0xf]
    %v80 = vld [vmem:[#allocation5 + $0x88] sm:$0xf]
    %v81 = vld [vmem:[#allocation5 + $0x8c] sm:$0xf]
    %v82 = vld [vmem:[#allocation5 + $0x90] sm:$0xf]
    %v83 = vld [vmem:[#allocation5 + $0x94] sm:$0xf]
    %v84 = vld [vmem:[#allocation5 + $0x98] sm:$0xf]
    %v85 = vld [vmem:[#allocation5 + $0x9c] sm:$0xf]
    %v86 = vld [vmem:[#allocation5 + $0xa0] sm:$0xf]
    %v87 = vld [vmem:[#allocation5 + $0xa4] sm:$0xf]
    %v88 = vld [vmem:[#allocation5 + $0xa8] sm:$0xf]
    %v89 = vld [vmem:[#allocation5 + $0xac] sm:$0xf]
    %v90 = vld [vmem:[#allocation5 + $0xb0] sm:$0xf]
    %v91 = vld [vmem:[#allocation5 + $0xb4] sm:$0xf]
    %v92 = vld [vmem:[#allocation5 + $0xb8] sm:$0xf]
    %v93 = vld [vmem:[#allocation5 + $0xbc] sm:$0xf]
    %v94 = vld [vmem:[#allocation5 + $0xc0] sm:$0xf]
    %v95 = vld [vmem:[#allocation5 + $0xc4] sm:$0xf]
    %v96 = vld [vmem:[#allocation5 + $0xc8] sm:$0xf]
    %v97 = vld [vmem:[#allocation5 + $0xcc] sm:$0xf]
    %v98 = vld [vmem:[#allocation5 + $0xd0] sm:$0xf]
    %v99 = vld [vmem:[#allocation5 + $0xd4] sm:$0xf]
    %v100 = vld [vmem:[#allocation5 + $0xd8] sm:$0xf]
    %v101 = vld [vmem:[#allocation5 + $0xdc] sm:$0xf]
    %v102 = vld [vmem:[#allocation5 + $0xe0] sm:$0xf]
    %v103 = vld [vmem:[#allocation5 + $0xe4] sm:$0xf]
    %v104 = vld [vmem:[#allocation5 + $0xe8] sm:$0xf]
    %v105 = vld [vmem:[#allocation5 + $0xec] sm:$0xf]
    %v106 = vld [vmem:[#allocation5 + $0xf0] sm:$0xf]
    %v107 = vld [vmem:[#allocation5 + $0xf4] sm:$0xf]
    %v108 = vld [vmem:[#allocation5 + $0xf8] sm:$0xf]
    %v109 = vld [vmem:[#allocation5 + $0xfc] sm:$0xf]
    %v110 = vld [vmem:[#allocation5 + $0x100] sm:$0xf]
    %v111 = vld [vmem:[#allocation5 + $0x104] sm:$0xf]
    %v112 = vld [vmem:[#allocation5 + $0x108] sm:$0xf]
    %v113 = vld [vmem:[#allocation5 + $0x10c] sm:$0xf]
    %v114 = vld [vmem:[#allocation5 + $0x110] sm:$0xf]
    %v115 = vld [vmem:[#allocation5 + $0x114] sm:$0xf]
    %v116 = vld [vmem:[#allocation5 + $0x118] sm:$0xf]
    %v117 = vld [vmem:[#allocation5 + $0x11c] sm:$0xf]
    %v118 = vld [vmem:[#allocation5 + $0x120] sm:$0xf]
    %v119 = vld [vmem:[#allocation5 + $0x124] sm:$0xf]
    %v120 = vld [vmem:[#allocation5 + $0x128] sm:$0xf]
    %v121 = vld [vmem:[#allocation5 + $0x12c] sm:$0xf]
    %v122 = vld [vmem:[#allocation5 + $0x130] sm:$0xf]
    %v123 = vld [vmem:[#allocation5 + $0x134] sm:$0xf]
    %v124 = vld [vmem:[#allocation5 + $0x138] sm:$0xf]
    %v125 = vld [vmem:[#allocation5 + $0x13c] sm:$0xf]
    %v126 = vld [vmem:[#allocation5 + $0x140] sm:$0xf]
    %v127 = vld [vmem:[#allocation5 + $0x144] sm:$0xf]
    %v128 = vld [vmem:[#allocation5 + $0x148] sm:$0xf]
    %v129 = vld [vmem:[#allocation5 + $0x14c] sm:$0xf]
    %v130 = vld [vmem:[#allocation5 + $0x150] sm:$0xf]
    %v131 = vld [vmem:[#allocation5 + $0x154] sm:$0xf]
    %v132 = vld [vmem:[#allocation5 + $0x158] sm:$0xf]
    %v133 = vld [vmem:[#allocation5 + $0x15c] sm:$0xf]
    %v134 = vld [vmem:[#allocation5 + $0x160] sm:$0xf]
    %v135 = vld [vmem:[#allocation5 + $0x164] sm:$0xf]
    %v136 = vld [vmem:[#allocation5 + $0x168] sm:$0xf]
    %v137 = vld [vmem:[#allocation5 + $0x16c] sm:$0xf]
    %v138 = vld [vmem:[#allocation5 + $0x170] sm:$0xf]
    %v139 = vld [vmem:[#allocation5 + $0x174] sm:$0xf]
    %v140 = vld [vmem:[#allocation5 + $0x178] sm:$0xf]
    %v141 = vld [vmem:[#allocation5 + $0x17c] sm:$0xf]
    %v142 = vld [vmem:[#allocation5 + $0x180] sm:$0xf]
    %v143 = vld [vmem:[#allocation5 + $0x184] sm:$0xf]
    %v144 = vld [vmem:[#allocation5 + $0x188] sm:$0xf]
    %v145 = vld [vmem:[#allocation5 + $0x18c] sm:$0xf]
    %v146 = vld [vmem:[#allocation5 + $0x190] sm:$0xf]
    %v147 = vld [vmem:[#allocation5 + $0x194] sm:$0xf]
    %v148 = vld [vmem:[#allocation5 + $0x198] sm:$0xf]
    %v149 = vld [vmem:[#allocation5 + $0x19c] sm:$0xf]
    %v150 = vld [vmem:[#allocation5 + $0x1a0] sm:$0xf]
    %v151 = vld [vmem:[#allocation5 + $0x1a4] sm:$0xf]
    %v152 = vld [vmem:[#allocation5 + $0x1a8] sm:$0xf]
    %v153 = vld [vmem:[#allocation5 + $0x1ac] sm:$0xf]
    %v154 = vld [vmem:[#allocation5 + $0x1b0] sm:$0xf]
    %v155 = vld [vmem:[#allocation5 + $0x1b4] sm:$0xf]
    %v156 = vld [vmem:[#allocation5 + $0x1b8] sm:$0xf]
    %v157 = vld [vmem:[#allocation5 + $0x1bc] sm:$0xf]
    %v158 = vld [vmem:[#allocation5 + $0x1c0] sm:$0xf]
    %v159 = vld [vmem:[#allocation5 + $0x1c4] sm:$0xf]
    %v160 = vld [vmem:[#allocation5 + $0x1c8] sm:$0xf]
    %v161 = vld [vmem:[#allocation5 + $0x1cc] sm:$0xf]
    %v162 = vld [vmem:[#allocation5 + $0x1d0] sm:$0xf]
    %v163 = vld [vmem:[#allocation5 + $0x1d4] sm:$0xf]
    %v164 = vld [vmem:[#allocation5 + $0x1d8] sm:$0xf]
    %v165 = vld [vmem:[#allocation5 + $0x1dc] sm:$0xf]
    %v166 = vld [vmem:[#allocation5 + $0x1e0] sm:$0xf]
    %v167 = vld [vmem:[#allocation5 + $0x1e4] sm:$0xf]
    %v168 = vld [vmem:[#allocation5 + $0x1e8] sm:$0xf]
    %v169 = vld [vmem:[#allocation5 + $0x1ec] sm:$0xf]
    %v170 = vld [vmem:[#allocation5 + $0x1f0] sm:$0xf]
    %v171 = vld [vmem:[#allocation5 + $0x1f4] sm:$0xf]
    %v172 = vld [vmem:[#allocation5 + $0x1f8] sm:$0xf]
    %v173 = vld [vmem:[#allocation5 + $0x1fc] sm:$0xf]
    %v174 = vld [vmem:[%s2] sm:$0x1]
    %v176 = vperm.slane %v174, 0
    %179 = vst [vmem:[#allocation1] ss:$9 sm:$0xff] %v45
    %v180 = vld [vmem:[#allocation1] sm:$0xff]
    %v181 = vld [vmem:[#allocation1 + $0x9] sm:$0xff]
    %v182 = vld [vmem:[#allocation1 + $0x12] sm:$0xff]
    %v183 = vld [vmem:[#allocation1 + $0x1b] sm:$0xff]
    %v184 = vld [vmem:[#allocation1 + $0x24] sm:$0xff]
    %v185 = vld [vmem:[#allocation1 + $0x2d] sm:$0xff]
    %v186 = vld [vmem:[#allocation1 + $0x36] sm:$0xff]
    %v187 = vld [vmem:[#allocation1 + $0x3f] sm:$0xff]
    %v324 = vunpack.c.l.b16 %v46
    %v325 = vunpack.c.l.b16 %v47
    %v326 = vunpack.c.l.b16 %v48
    %v327 = vunpack.c.l.b16 %v49
    %v328 = vunpack.c.l.b16 %v50
    %v329 = vunpack.c.l.b16 %v51
    %v330 = vunpack.c.l.b16 %v52
    %v331 = vunpack.c.l.b16 %v53
    %v332 = vunpack.c.l.b16 %v54
    %v333 = vunpack.c.l.b16 %v55
    %v334 = vunpack.c.l.b16 %v56
    %v335 = vunpack.c.l.b16 %v57
    %v336 = vunpack.c.l.b16 %v58
    %v337 = vunpack.c.l.b16 %v59
    %v338 = vunpack.c.l.b16 %v60
    %v339 = vunpack.c.l.b16 %v61
    %v340 = vunpack.c.l.b16 %v62
    %v341 = vunpack.c.l.b16 %v63
    %v342 = vunpack.c.l.b16 %v64
    %v343 = vunpack.c.l.b16 %v65
    %v344 = vunpack.c.l.b16 %v66
    %v345 = vunpack.c.l.b16 %v67
    %v346 = vunpack.c.l.b16 %v68
    %v347 = vunpack.c.l.b16 %v69
    %v348 = vunpack.c.l.b16 %v70
    %v349 = vunpack.c.l.b16 %v71
    %v350 = vunpack.c.l.b16 %v72
    %v351 = vunpack.c.l.b16 %v73
    %v352 = vunpack.c.l.b16 %v74
    %v353 = vunpack.c.l.b16 %v75
    %v354 = vunpack.c.l.b16 %v76
    %v355 = vunpack.c.l.b16 %v77
    %v356 = vunpack.c.l.b16 %v78
    %v357 = vunpack.c.l.b16 %v79
    %v358 = vunpack.c.l.b16 %v80
    %v359 = vunpack.c.l.b16 %v81
    %v360 = vunpack.c.l.b16 %v82
    %v361 = vunpack.c.l.b16 %v83
    %v362 = vunpack.c.l.b16 %v84
    %v363 = vunpack.c.l.b16 %v85
    %v364 = vunpack.c.l.b16 %v86
    %v365 = vunpack.c.l.b16 %v87
    %v366 = vunpack.c.l.b16 %v88
    %v367 = vunpack.c.l.b16 %v89
    %v368 = vunpack.c.l.b16 %v90
    %v369 = vunpack.c.l.b16 %v91
    %v370 = vunpack.c.l.b16 %v92
    %v371 = vunpack.c.l.b16 %v93
    %v372 = vunpack.c.l.b16 %v94
    %v373 = vunpack.c.l.b16 %v95
    %v374 = vunpack.c.l.b16 %v96
    %v375 = vunpack.c.l.b16 %v97
    %v376 = vunpack.c.l.b16 %v98
    %v377 = vunpack.c.l.b16 %v99
    %v378 = vunpack.c.l.b16 %v100
    %v379 = vunpack.c.l.b16 %v101
    %v380 = vunpack.c.l.b16 %v102
    %v381 = vunpack.c.l.b16 %v103
    %v382 = vunpack.c.l.b16 %v104
    %v383 = vunpack.c.l.b16 %v105
    %v384 = vunpack.c.l.b16 %v106
    %v385 = vunpack.c.l.b16 %v107
    %v386 = vunpack.c.l.b16 %v108
    %v387 = vunpack.c.l.b16 %v109
    %v388 = vunpack.c.l.b16 %v110
    %v389 = vunpack.c.l.b16 %v111
    %v390 = vunpack.c.l.b16 %v112
    %v391 = vunpack.c.l.b16 %v113
    %v392 = vunpack.c.l.b16 %v114
    %v393 = vunpack.c.l.b16 %v115
    %v394 = vunpack.c.l.b16 %v116
    %v395 = vunpack.c.l.b16 %v117
    %v396 = vunpack.c.l.b16 %v118
    %v397 = vunpack.c.l.b16 %v119
    %v398 = vunpack.c.l.b16 %v120
    %v399 = vunpack.c.l.b16 %v121
    %v400 = vunpack.c.l.b16 %v122
    %v401 = vunpack.c.l.b16 %v123
    %v402 = vunpack.c.l.b16 %v124
    %v403 = vunpack.c.l.b16 %v125
    %v404 = vunpack.c.l.b16 %v126
    %v405 = vunpack.c.l.b16 %v127
    %v406 = vunpack.c.l.b16 %v128
    %v407 = vunpack.c.l.b16 %v129
    %v408 = vunpack.c.l.b16 %v130
    %v409 = vunpack.c.l.b16 %v131
    %v410 = vunpack.c.l.b16 %v132
    %v411 = vunpack.c.l.b16 %v133
    %v412 = vunpack.c.l.b16 %v134
    %v413 = vunpack.c.l.b16 %v135
    %v414 = vunpack.c.l.b16 %v136
    %v415 = vunpack.c.l.b16 %v137
    %v416 = vunpack.c.l.b16 %v138
    %v417 = vunpack.c.l.b16 %v139
    %v418 = vunpack.c.l.b16 %v140
    %v419 = vunpack.c.l.b16 %v141
    %v420 = vunpack.c.l.b16 %v142
    %v421 = vunpack.c.l.b16 %v143
    %v422 = vunpack.c.l.b16 %v144
    %v423 = vunpack.c.l.b16 %v145
    %v424 = vunpack.c.l.b16 %v146
    %v425 = vunpack.c.l.b16 %v147
    %v426 = vunpack.c.l.b16 %v148
    %v427 = vunpack.c.l.b16 %v149
    %v428 = vunpack.c.l.b16 %v150
    %v429 = vunpack.c.l.b16 %v151
    %v430 = vunpack.c.l.b16 %v152
    %v431 = vunpack.c.l.b16 %v153
    %v432 = vunpack.c.l.b16 %v154
    %v433 = vunpack.c.l.b16 %v155
    %v434 = vunpack.c.l.b16 %v156
    %v435 = vunpack.c.l.b16 %v157
    %v436 = vunpack.c.l.b16 %v158
    %v437 = vunpack.c.l.b16 %v159
    %v438 = vunpack.c.l.b16 %v160
    %v439 = vunpack.c.l.b16 %v161
    %v440 = vunpack.c.l.b16 %v162
    %v441 = vunpack.c.l.b16 %v163
    %v442 = vunpack.c.l.b16 %v164
    %v443 = vunpack.c.l.b16 %v165
    %v444 = vunpack.c.l.b16 %v166
    %v445 = vunpack.c.l.b16 %v167
    %v446 = vunpack.c.l.b16 %v168
    %v447 = vunpack.c.l.b16 %v169
    %v448 = vunpack.c.l.b16 %v170
    %v449 = vunpack.c.l.b16 %v171
    %v450 = vunpack.c.l.b16 %v172
    %v451 = vunpack.c.l.b16 %v173
    %v452 = vpack.c.b16 %v325, %v324
    %v453 = vpack.c.b16 %v327, %v326
    %v454 = vpack.c.b16 %v329, %v328
    %v455 = vpack.c.b16 %v331, %v330
    %v456 = vpack.c.b16 %v333, %v332
    %v457 = vpack.c.b16 %v335, %v334
    %v458 = vpack.c.b16 %v337, %v336
    %v459 = vpack.c.b16 %v339, %v338
    %v460 = vpack.c.b16 %v341, %v340
    %v461 = vpack.c.b16 %v343, %v342
    %v462 = vpack.c.b16 %v345, %v344
    %v463 = vpack.c.b16 %v347, %v346
    %v464 = vpack.c.b16 %v349, %v348
    %v465 = vpack.c.b16 %v351, %v350
    %v466 = vpack.c.b16 %v353, %v352
    %v467 = vpack.c.b16 %v355, %v354
    %v468 = vpack.c.b16 %v357, %v356
    %v469 = vpack.c.b16 %v359, %v358
    %v470 = vpack.c.b16 %v361, %v360
    %v471 = vpack.c.b16 %v363, %v362
    %v472 = vpack.c.b16 %v365, %v364
    %v473 = vpack.c.b16 %v367, %v366
    %v474 = vpack.c.b16 %v369, %v368
    %v475 = vpack.c.b16 %v371, %v370
    %v476 = vpack.c.b16 %v373, %v372
    %v477 = vpack.c.b16 %v375, %v374
    %v478 = vpack.c.b16 %v377, %v376
    %v479 = vpack.c.b16 %v379, %v378
    %v480 = vpack.c.b16 %v381, %v380
    %v481 = vpack.c.b16 %v383, %v382
    %v482 = vpack.c.b16 %v385, %v384
    %v483 = vpack.c.b16 %v387, %v386
    %v484 = vpack.c.b16 %v389, %v388
    %v485 = vpack.c.b16 %v391, %v390
    %v486 = vpack.c.b16 %v393, %v392
    %v487 = vpack.c.b16 %v395, %v394
    %v488 = vpack.c.b16 %v397, %v396
    %v489 = vpack.c.b16 %v399, %v398
    %v490 = vpack.c.b16 %v401, %v400
    %v491 = vpack.c.b16 %v403, %v402
    %v492 = vpack.c.b16 %v405, %v404
    %v493 = vpack.c.b16 %v407, %v406
    %v494 = vpack.c.b16 %v409, %v408
    %v495 = vpack.c.b16 %v411, %v410
    %v496 = vpack.c.b16 %v413, %v412
    %v497 = vpack.c.b16 %v415, %v414
    %v498 = vpack.c.b16 %v417, %v416
    %v499 = vpack.c.b16 %v419, %v418
    %v500 = vpack.c.b16 %v421, %v420
    %v501 = vpack.c.b16 %v423, %v422
    %v502 = vpack.c.b16 %v425, %v424
    %v503 = vpack.c.b16 %v427, %v426
    %v504 = vpack.c.b16 %v429, %v428
    %v505 = vpack.c.b16 %v431, %v430
    %v506 = vpack.c.b16 %v433, %v432
    %v507 = vpack.c.b16 %v435, %v434
    %v508 = vpack.c.b16 %v437, %v436
    %v509 = vpack.c.b16 %v439, %v438
    %v510 = vpack.c.b16 %v441, %v440
    %v511 = vpack.c.b16 %v443, %v442
    %v512 = vpack.c.b16 %v445, %v444
    %v513 = vpack.c.b16 %v447, %v446
    %v514 = vpack.c.b16 %v449, %v448
    %v515 = vpack.c.b16 %v451, %v450
    %580 = vmatpush.bf16.msra.mxu0 %v459
    %581 = vmatpush.bf16.msra.mxu0 %v458
    %582 = vmatpush.bf16.msra.mxu0 %v457
    %583 = vmatpush.bf16.msra.mxu0 %v456
    %584 = vmatpush.bf16.msra.mxu0 %v455
    %585 = vmatpush.bf16.msra.mxu0 %v454
    %586 = vmatpush.bf16.msra.mxu0 %v453
    %587 = vmatpush.bf16.msra.mxu0 %v452
    %588 = vmatmul.bf16.gmra.mxu0 %v180
    %v589 = vpop.f32.mrf.mxu0
    %v590 = vadd.f32 %v176, %v589
    %v591 = vpop.f32.mrf.mxu0
    %592 = vdwg.mxu0
    %593 = vmatpush.bf16.msra.mxu0 %v467
    %594 = vmatpush.bf16.msra.mxu0 %v466
    %595 = vmatpush.bf16.msra.mxu0 %v465
    %596 = vmatpush.bf16.msra.mxu0 %v464
    %597 = vmatpush.bf16.msra.mxu0 %v463
    %598 = vmatpush.bf16.msra.mxu0 %v462
    %599 = vmatpush.bf16.msra.mxu0 %v461
    %600 = vmatpush.bf16.msra.mxu0 %v460
    %601 = vmatmul.bf16.gmra.mxu0 %v181
    %v602 = vpop.f32.mrf.mxu0
    %v603 = vadd.f32 %v590, %v602
    %v604 = vpop.f32.mrf.mxu0
    %605 = vdwg.mxu0
    %606 = vmatpush.bf16.msra.mxu0 %v475
    %607 = vmatpush.bf16.msra.mxu0 %v474
    %608 = vmatpush.bf16.msra.mxu0 %v473
    %609 = vmatpush.bf16.msra.mxu0 %v472
    %610 = vmatpush.bf16.msra.mxu0 %v471
    %611 = vmatpush.bf16.msra.mxu0 %v470
    %612 = vmatpush.bf16.msra.mxu0 %v469
    %613 = vmatpush.bf16.msra.mxu0 %v468
    %614 = vmatmul.bf16.gmra.mxu0 %v182
    %v615 = vpop.f32.mrf.mxu0
    %v616 = vadd.f32 %v603, %v615
    %v617 = vpop.f32.mrf.mxu0
    %618 = vdwg.mxu0
    %619 = vmatpush.bf16.msra.mxu0 %v483
    %620 = vmatpush.bf16.msra.mxu0 %v482
    %621 = vmatpush.bf16.msra.mxu0 %v481
    %622 = vmatpush.bf16.msra.mxu0 %v480
    %623 = vmatpush.bf16.msra.mxu0 %v479
    %624 = vmatpush.bf16.msra.mxu0 %v478
    %625 = vmatpush.bf16.msra.mxu0 %v477
    %626 = vmatpush.bf16.msra.mxu0 %v476
    %627 = vmatmul.bf16.gmra.mxu0 %v183
    %v628 = vpop.f32.mrf.mxu0
    %v629 = vadd.f32 %v616, %v628
    %v630 = vpop.f32.mrf.mxu0
    %631 = vdwg.mxu0
    %632 = vmatpush.bf16.msra.mxu0 %v491
    %633 = vmatpush.bf16.msra.mxu0 %v490
    %634 = vmatpush.bf16.msra.mxu0 %v489
    %635 = vmatpush.bf16.msra.mxu0 %v488
    %636 = vmatpush.bf16.msra.mxu0 %v487
    %637 = vmatpush.bf16.msra.mxu0 %v486
    %638 = vmatpush.bf16.msra.mxu0 %v485
    %639 = vmatpush.bf16.msra.mxu0 %v484
    %640 = vmatmul.bf16.gmra.mxu0 %v184
    %v641 = vpop.f32.mrf.mxu0
    %v642 = vadd.f32 %v629, %v641
    %v643 = vpop.f32.mrf.mxu0
    %644 = vdwg.mxu0
    %645 = vmatpush.bf16.msra.mxu0 %v499
    %646 = vmatpush.bf16.msra.mxu0 %v498
    %647 = vmatpush.bf16.msra.mxu0 %v497
    %648 = vmatpush.bf16.msra.mxu0 %v496
    %649 = vmatpush.bf16.msra.mxu0 %v495
    %650 = vmatpush.bf16.msra.mxu0 %v494
    %651 = vmatpush.bf16.msra.mxu0 %v493
    %652 = vmatpush.bf16.msra.mxu0 %v492
    %653 = vmatmul.bf16.gmra.mxu0 %v185
    %v654 = vpop.f32.mrf.mxu0
    %v655 = vadd.f32 %v642, %v654
    %v656 = vpop.f32.mrf.mxu0
    %657 = vdwg.mxu0
    %658 = vmatpush.bf16.msra.mxu0 %v507
    %659 = vmatpush.bf16.msra.mxu0 %v506
    %660 = vmatpush.bf16.msra.mxu0 %v505
    %661 = vmatpush.bf16.msra.mxu0 %v504
    %662 = vmatpush.bf16.msra.mxu0 %v503
    %663 = vmatpush.bf16.msra.mxu0 %v502
    %664 = vmatpush.bf16.msra.mxu0 %v501
    %665 = vmatpush.bf16.msra.mxu0 %v500
    %666 = vmatmul.bf16.gmra.mxu0 %v186
    %v667 = vpop.f32.mrf.mxu0
    %v668 = vadd.f32 %v655, %v667
    %v669 = vpop.f32.mrf.mxu0
    %670 = vdwg.mxu0
    %671 = vmatpush.bf16.msra.mxu0 %v515
    %672 = vmatpush.bf16.msra.mxu0 %v514
    %673 = vmatpush.bf16.msra.mxu0 %v513
    %674 = vmatpush.bf16.msra.mxu0 %v512
    %675 = vmatpush.bf16.msra.mxu0 %v511
    %676 = vmatpush.bf16.msra.mxu0 %v510
    %677 = vmatpush.bf16.msra.mxu0 %v509
    %678 = vmatpush.bf16.msra.mxu0 %v508
    %679 = vmatmul.bf16.gmra.mxu0 %v187
    %v680 = vpop.f32.mrf.mxu0
    %v681 = vadd.f32 %v668, %v680
    %v682 = vpop.f32.mrf.mxu0
    %683 = vdwg.mxu0
    %v684 = vmax.f32 %v681, 0.0
    %685 = vst [vmem:[#allocation7] sm:$0x3] %v684
    // Predicated region
    $region22: #{tpu_custom_call.1} parent=1 // pred_check
      _
    $region23: #{tpu_custom_call.1} parent=1 // pred_check_branch
      %687 = sbr.rel (0) target = $region25
    $region24: #{tpu_custom_call.1} parent=1 // pred_region
      %689 = vsyncadd [#allocation4], 0
      %s691 = sshll.u32 [#allocation7], 4
      %s692 = int_to_ptr.vmem [resolvable:$true] %s691
      %s693 = sshll.u32 %s3, 4
      %s694 = int_to_ptr.hbm [resolvable:$true] %s693
      %696 = dma.vmem_to_hbm [thread:$0]  %s692, 32, %s694, [#allocation4]
    $region25: #{tpu_custom_call.1} parent=1 // pred_fallthru
      _
    // Predicated region
    $region26: #{tpu_custom_call.1} parent=1 // pred_check
      _
    $region27: #{tpu_custom_call.1} parent=1 // pred_check_branch
      %698 = sbr.rel (0) target = $region29
    $region28: #{tpu_custom_call.1} parent=1 // pred_region
      %700 = dma.done [#allocation4], 32
    $region29: #{tpu_custom_call.1} parent=1 // pred_fallthru
      _
    %701 = vsyncpa [#allocation3], 1
    %702 = vsyncpa [#allocation6], 1
    %703 = vsyncpa [#allocation4], 1

</llo_original>
